<compile_context>
chip_gen: v7x
topology: tpu7x:2x2x1
jax: 0.10.0
libtpu: 0.0.40
codegen_flags: <defaults>
</compile_context>

<pallas_src>
import numpy as np
import jax
import jax.numpy as jnp
from jax.experimental import pallas as pl
from jax.experimental.pallas import tpu as pltpu


NEG_FILL = -1e30  # bias fill for padded output columns -> softmax weight 0


def _mlp_kernel(x_ref, w0_ref, b0_ref, w1_ref, b1_ref, w2_ref, b2_ref, o_ref):
    cd = w0_ref.dtype  # MXU-input dtype (bf16 by default, f32 optional)

    # Cast x to the compute dtype *inside* the kernel (register-level), so the
    # wrapper never runs a separate HBM pad/cast pass over the batch array.
    x = x_ref[...].astype(cd)

    # Hidden layer 0: Linear + ReLU (f32 accumulation, f32 elementwise)
    h = jnp.dot(x, w0_ref[...], preferred_element_type=jnp.float32)
    h = jnp.maximum(h + b0_ref[...], 0.0)

    # Hidden layer 1: Linear + ReLU
    h = jnp.dot(h.astype(cd), w1_ref[...], preferred_element_type=jnp.float32)
    h = jnp.maximum(h + b1_ref[...], 0.0)

    # Output layer: Linear + Softmax(dim=1). Padded logit columns carry a
    # -1e30 f32 bias, so exp(.) underflows to 0 and they drop out of the
    # softmax exactly.
    logits = jnp.dot(h.astype(cd), w2_ref[...], preferred_element_type=jnp.float32)
    logits = logits + b2_ref[...]
    m = jnp.max(logits, axis=-1, keepdims=True)
    e = jnp.exp(logits - m)
    denom = jnp.sum(e, axis=-1, keepdims=True)
    r = pl.reciprocal(denom, approx=True)      # EUP vrcp (separate VLIW slot)
    r = r * (2.0 - denom * r)                  # one Newton step -> ~f32 exact
    o_ref[...] = (e * r).astype(o_ref.dtype)


def _round_up(n: int, m: int) -> int:
    return ((n + m - 1) // m) * m


def neural_network_forward(x, params, *, compute_dtype=jnp.bfloat16,
                           out_dtype=jnp.float32, batch_tile=2048,
                           min_grid_steps=8):
    """params = [(w0, b0), (w1, b1), (w2, b2)]  (pesos: (in,out), sesgos: (out,))."""
    (w0, b0), (w1, b1), (w2, b2) = params
    B, n_in = x.shape
    n_out = w2.shape[1]

    # nn.Module does x.float(); only materialize a cast if x isn't already f32.
    if x.dtype != jnp.float32:
        x = x.astype(jnp.float32)

    # ---- Pad hidden/output widths to lane-dense multiples of 128 ----
    # The input width is deliberately left unpadded: a (tb, n_in) block whose
    # last dim equals the full array dim is legal, and the MXU pads K
    # internally, so no wrapper-side pad pass over the batch-sized x array.
    d_h0 = _round_up(w0.shape[1], 128)
    d_h1 = _round_up(w1.shape[1], 128)
    d_out = _round_up(n_out, 128)

    def pad_w(w, rows, cols):
        w = w.astype(jnp.float32)
        return jnp.pad(w, ((0, rows - w.shape[0]), (0, cols - w.shape[1])))

    w0p = pad_w(w0, n_in, d_h0).astype(compute_dtype)
    w1p = pad_w(w1, d_h0, d_h1).astype(compute_dtype)
    w2p = pad_w(w2, d_h1, d_out).astype(compute_dtype)

    # Biases stay f32 (the -1e30 padded-column trick relies on f32 range).
    b0p = jnp.pad(b0.astype(jnp.float32), (0, d_h0 - b0.shape[0])).reshape(1, d_h0)
    b1p = jnp.pad(b1.astype(jnp.float32), (0, d_h1 - b1.shape[0])).reshape(1, d_h1)
    b2p = jnp.pad(b2.astype(jnp.float32), (0, d_out - b2.shape[0]),
                  constant_values=NEG_FILL).reshape(1, d_out)

    # ---- Batch tiling ----
    # Granularity: 16 rows whenever any 16-bit operand is involved (bf16
    # sublane packing), else 8.  Cap tb so the grid has >= min_grid_steps
    # steps, so the "parallel" batch axis actually feeds both TensorCores on
    # v7x and leaves pipelining depth on v5e/v6e.
    min_itemsize = min(jnp.dtype(compute_dtype).itemsize,
                       jnp.dtype(out_dtype).itemsize,
                       jnp.dtype(x.dtype).itemsize)
    gran = 16 if min_itemsize < 4 else 8
    tb = min(_round_up(batch_tile, gran),
             _round_up(pl.cdiv(B, min_grid_steps), gran))
    tb = max(tb, gran)
    b_pad = _round_up(B, tb)

    # Only row-pad when the tile doesn't divide the batch. Zero rows are
    # harmless: softmax is row-local and padded rows are sliced off.
    xp = x if b_pad == B else jnp.pad(x, ((0, b_pad - B), (0, 0)))

    grid = (b_pad // tb,)

    # Weights / biases: constant index_map -> stay resident in VMEM.
    # TODO(synk): pipeline_mode=pl.Buffered(1) would drop their dead second
    # buffer; skipped while they total <200 KiB.
    resident = lambda a: pl.BlockSpec(a.shape, lambda i: (0, 0))

    # v7x guard: 64 MiB physical VMEM / 32 MiB scoped default. Default
    # double-buffering roughly doubles resident-operand footprint.
    resident_bytes = sum(int(np.prod(a.shape)) * a.dtype.itemsize
                         for a in (w0p, b0p, w1p, b1p, w2p, b2p))
    if 2 * resident_bytes > 24 * 1024 * 1024:
        # TODO(synk): add a K/N grid axis (or pltpu.emit_pipeline over K) and
        # raise vmem_limit_bytes before hidden widths reach this size.
        raise ValueError(
            f"resident weights ({resident_bytes} B) too large for single-shot "
            "VMEM residency; add K/N tiling")

    itemsize_c = jnp.dtype(compute_dtype).itemsize
    cost = pl.CostEstimate(
        flops=2 * b_pad * (n_in * d_h0 + d_h0 * d_h1 + d_h1 * d_out),
        transcendentals=b_pad * d_out + b_pad,          # exp + reciprocal
        bytes_accessed=(xp.size * xp.dtype.itemsize
                        + (w0p.size + w1p.size + w2p.size) * itemsize_c
                        + (b0p.size + b1p.size + b2p.size) * 4
                        + b_pad * d_out * jnp.dtype(out_dtype).itemsize),
    )

    out = pl.pallas_call(
        _mlp_kernel,
        out_shape=jax.ShapeDtypeStruct((b_pad, d_out), out_dtype),
        grid=grid,
        in_specs=[
            pl.BlockSpec((tb, n_in), lambda i: (i, 0)),   # x: tiled over batch
            resident(w0p), resident(b0p),
            resident(w1p), resident(b1p),
            resident(w2p), resident(b2p),
        ],
        out_specs=pl.BlockSpec((tb, d_out), lambda i: (i, 0)),
        compiler_params=pltpu.CompilerParams(
            dimension_semantics=("parallel",)),           # megacore on v7x
        cost_estimate=cost,
    )(xp, w0p, b0p, w1p, b1p, w2p, b2p)

    # Drop padded rows / padded logit columns. Under jit this slice fuses with
    # the consumer; callers that can consume the padded block should do so.
    return out[:B, :n_out]


def make_params(neuronas_entrada, capas_ocultas, neuronas_salida, seed=0):
    """Deterministically build Capa-style weights: uniform(-1, 1)."""
    rng = np.random.RandomState(seed)
    dims = [neuronas_entrada] + list(capas_ocultas) + [neuronas_salida]
    params = []
    for d_in, d_out in zip(dims[:-1], dims[1:]):
        pesos = rng.uniform(-1.0, 1.0, size=(d_in, d_out)).astype(np.float32)
        sesgos = rng.uniform(-1.0, 1.0, size=(d_out,)).astype(np.float32)
        params.append((jnp.asarray(pesos), jnp.asarray(sesgos)))
    return params


def reference_forward(x, params, compute_dtype=jnp.float32):
    """Pure-JAX reference matching the PyTorch stack (same cast policy as kernel)."""
    h = x.astype(jnp.float32)
    n = len(params)
    for i, (w, b) in enumerate(params):
        h = jnp.dot(h.astype(compute_dtype), w.astype(compute_dtype),
                    preferred_element_type=jnp.float32) + b.astype(jnp.float32)
        if i < n - 1:
            h = jnp.maximum(h, 0.0)          # nn.ReLU
        else:
            h = jax.nn.softmax(h, axis=1)    # nn.Softmax(dim=1)
    return h


if __name__ == "__main__":
    # Shapes implied by the module: Gen(entrada=32, salida=16, ocultas=[64, 64]).
    # batch=50 exercises the batch grid (several steps via the min_grid_steps
    # cap) plus uneven-row padding on both the bf16 and f32 paths.
    batch = 50
    n_in, hidden, n_out = 32, [64, 64], 16

    params = make_params(n_in, hidden, n_out, seed=0)
    key = jax.random.PRNGKey(0)
    x = jax.random.normal(key, (batch, n_in), dtype=jnp.float32)

    # f32 path: exact-semantics check against the pure-f32 reference.
    out_f32 = jax.block_until_ready(
        neural_network_forward(x, params, compute_dtype=jnp.float32))
    ref_f32 = reference_forward(x, params, compute_dtype=jnp.float32)
    np.testing.assert_allclose(np.asarray(out_f32), np.asarray(ref_f32),
                               rtol=1e-5, atol=1e-5)

    # Default (bf16 MXU-input) path: compare against a reference applying the
    # identical bf16 casts (f32 accumulation everywhere).
    out_bf16 = jax.block_until_ready(
        neural_network_forward(x, params))          # compute_dtype=bf16 default
    ref_bf16 = reference_forward(x, params, compute_dtype=jnp.bfloat16)
    np.testing.assert_allclose(np.asarray(out_bf16), np.asarray(ref_bf16),
                               rtol=1e-3, atol=2e-4)
    # Sanity: bf16 path stays close to the exact f32 module output.
    np.testing.assert_allclose(np.asarray(out_bf16), np.asarray(ref_f32),
                               rtol=5e-2, atol=2e-2)

    print("KERNEL_OK")
</pallas_src>

<mosaic_0001>
module attributes {stable_mosaic.version = 11 : i64} {
  func.func @_mlp_kernel(%arg0: i32, %arg1: memref<8x32xf32, #tpu.memory_space<vmem>>, %arg2: memref<32x128xf32, #tpu.memory_space<vmem>>, %arg3: memref<1x128xf32, #tpu.memory_space<vmem>>, %arg4: memref<128x128xf32, #tpu.memory_space<vmem>>, %arg5: memref<1x128xf32, #tpu.memory_space<vmem>>, %arg6: memref<128x128xf32, #tpu.memory_space<vmem>>, %arg7: memref<1x128xf32, #tpu.memory_space<vmem>>, %arg8: memref<8x128xf32, #tpu.memory_space<vmem>>) attributes {dimension_semantics = [#tpu.dimension_semantics<parallel>], iteration_bounds = array<i64: 7>, scalar_prefetch = 0 : i64, scratch_operands = 0 : i64, tpu.core_type = #tpu.core_type<tc>, window_params = [{transform_indices = @transform_0, window_bounds = array<i64: 8, 32>}, {pipeline_mode = #tpu.pipeline_mode<synchronous>, transform_indices = @transform_1, window_bounds = array<i64: 32, 128>}, {pipeline_mode = #tpu.pipeline_mode<synchronous>, transform_indices = @transform_2, window_bounds = array<i64: 1, 128>}, {pipeline_mode = #tpu.pipeline_mode<synchronous>, transform_indices = @transform_3, window_bounds = array<i64: 128, 128>}, {pipeline_mode = #tpu.pipeline_mode<synchronous>, transform_indices = @transform_4, window_bounds = array<i64: 1, 128>}, {pipeline_mode = #tpu.pipeline_mode<synchronous>, transform_indices = @transform_5, window_bounds = array<i64: 128, 128>}, {pipeline_mode = #tpu.pipeline_mode<synchronous>, transform_indices = @transform_6, window_bounds = array<i64: 1, 128>}, {transform_indices = @transform_7, window_bounds = array<i64: 8, 128>}]} {
    %c0 = arith.constant 0 : index
    %c0_0 = arith.constant 0 : index
    %0 = vector.load %arg1[%c0, %c0_0] : memref<8x32xf32, #tpu.memory_space<vmem>>, vector<8x32xf32>
    %c0_1 = arith.constant 0 : index
    %c0_2 = arith.constant 0 : index
    %1 = vector.load %arg2[%c0_1, %c0_2] : memref<32x128xf32, #tpu.memory_space<vmem>>, vector<32x128xf32>
    %cst = arith.constant dense<0.000000e+00> : vector<8x128xf32>
    %2 = tpu.matmul %0, %1, %cst {dimension_numbers = #tpu.dot_dimension_numbers<[1], [0], [0], [1], [0, 0, 1, 1], [], []>} : vector<8x32xf32>, vector<32x128xf32>, vector<8x128xf32> -> vector<8x128xf32>
    %c0_3 = arith.constant 0 : index
    %c0_4 = arith.constant 0 : index
    %3 = vector.load %arg3[%c0_3, %c0_4] : memref<1x128xf32, #tpu.memory_space<vmem>>, vector<1x128xf32>
    %4 = vector.broadcast %3 : vector<1x128xf32> to vector<8x128xf32>
    %5 = arith.addf %2, %4 : vector<8x128xf32>
    %cst_5 = arith.constant 0.000000e+00 : f32
    %6 = vector.broadcast %cst_5 : f32 to vector<8x128xf32>
    %7 = arith.maximumf %5, %6 : vector<8x128xf32>
    %c0_6 = arith.constant 0 : index
    %c0_7 = arith.constant 0 : index
    %8 = vector.load %arg4[%c0_6, %c0_7] : memref<128x128xf32, #tpu.memory_space<vmem>>, vector<128x128xf32>
    %cst_8 = arith.constant dense<0.000000e+00> : vector<8x128xf32>
    %9 = tpu.matmul %7, %8, %cst_8 {dimension_numbers = #tpu.dot_dimension_numbers<[1], [0], [0], [1], [0, 0, 1, 1], [], []>} : vector<8x128xf32>, vector<128x128xf32>, vector<8x128xf32> -> vector<8x128xf32>
    %c0_9 = arith.constant 0 : index
    %c0_10 = arith.constant 0 : index
    %10 = vector.load %arg5[%c0_9, %c0_10] : memref<1x128xf32, #tpu.memory_space<vmem>>, vector<1x128xf32>
    %11 = vector.broadcast %10 : vector<1x128xf32> to vector<8x128xf32>
    %12 = arith.addf %9, %11 : vector<8x128xf32>
    %cst_11 = arith.constant 0.000000e+00 : f32
    %13 = vector.broadcast %cst_11 : f32 to vector<8x128xf32>
    %14 = arith.maximumf %12, %13 : vector<8x128xf32>
    %c0_12 = arith.constant 0 : index
    %c0_13 = arith.constant 0 : index
    %15 = vector.load %arg6[%c0_12, %c0_13] : memref<128x128xf32, #tpu.memory_space<vmem>>, vector<128x128xf32>
    %cst_14 = arith.constant dense<0.000000e+00> : vector<8x128xf32>
    %16 = tpu.matmul %14, %15, %cst_14 {dimension_numbers = #tpu.dot_dimension_numbers<[1], [0], [0], [1], [0, 0, 1, 1], [], []>} : vector<8x128xf32>, vector<128x128xf32>, vector<8x128xf32> -> vector<8x128xf32>
    %c0_15 = arith.constant 0 : index
    %c0_16 = arith.constant 0 : index
    %17 = vector.load %arg7[%c0_15, %c0_16] : memref<1x128xf32, #tpu.memory_space<vmem>>, vector<1x128xf32>
    %18 = vector.broadcast %17 : vector<1x128xf32> to vector<8x128xf32>
    %19 = arith.addf %16, %18 : vector<8x128xf32>
    %cst_17 = arith.constant dense<0xFF800000> : vector<8xf32>
    %20 = vector.multi_reduction <maximumf>, %19, %cst_17 [1] : vector<8x128xf32> to vector<8xf32>
    %21 = vector.shape_cast %20 : vector<8xf32> to vector<8x1xf32>
    %22 = vector.broadcast %21 : vector<8x1xf32> to vector<8x128xf32>
    %23 = arith.subf %19, %22 : vector<8x128xf32>
    %24 = math.exp %23 : vector<8x128xf32>
    %cst_18 = arith.constant dense<0.000000e+00> : vector<8xf32>
    %25 = vector.multi_reduction <add>, %24, %cst_18 [1] : vector<8x128xf32> to vector<8xf32>
    %26 = vector.shape_cast %25 : vector<8xf32> to vector<8x1xf32>
    %27 = tpu.reciprocal %26 {approx = true} : vector<8x1xf32> -> vector<8x1xf32>
    %28 = arith.mulf %26, %27 : vector<8x1xf32>
    %cst_19 = arith.constant 2.000000e+00 : f32
    %29 = vector.broadcast %cst_19 : f32 to vector<8x1xf32>
    %30 = arith.subf %29, %28 : vector<8x1xf32>
    %31 = arith.mulf %27, %30 : vector<8x1xf32>
    %32 = vector.broadcast %31 : vector<8x1xf32> to vector<8x128xf32>
    %33 = arith.mulf %24, %32 : vector<8x128xf32>
    %c0_20 = arith.constant 0 : index
    %c0_21 = arith.constant 0 : index
    %34 = vector.load %arg8[%c0_20, %c0_21] : memref<8x128xf32, #tpu.memory_space<vmem>>, vector<8x128xf32>
    tpu.vector_store %arg8[%c0_20, %c0_21], %33 {strides = array<i32>} : memref<8x128xf32, #tpu.memory_space<vmem>>, vector<8x128xf32>,
    return
  }
  func.func @transform_0(%arg0: i32) -> (i32, i32) {
    %c0_i32 = arith.constant 0 : i32
    %c0_i32_0 = arith.constant 0 : i32
    return %arg0, %c0_i32 : i32, i32
  }
  func.func @transform_1(%arg0: i32) -> (i32, i32) {
    %c0_i32 = arith.constant 0 : i32
    %c0_i32_0 = arith.constant 0 : i32
    %c0_i32_1 = arith.constant 0 : i32
    return %c0_i32, %c0_i32_0 : i32, i32
  }
  func.func @transform_2(%arg0: i32) -> (i32, i32) {
    %c0_i32 = arith.constant 0 : i32
    %c0_i32_0 = arith.constant 0 : i32
    %c0_i32_1 = arith.constant 0 : i32
    return %c0_i32, %c0_i32_0 : i32, i32
  }
  func.func @transform_3(%arg0: i32) -> (i32, i32) {
    %c0_i32 = arith.constant 0 : i32
    %c0_i32_0 = arith.constant 0 : i32
    %c0_i32_1 = arith.constant 0 : i32
    return %c0_i32, %c0_i32_0 : i32, i32
  }
  func.func @transform_4(%arg0: i32) -> (i32, i32) {
    %c0_i32 = arith.constant 0 : i32
    %c0_i32_0 = arith.constant 0 : i32
    %c0_i32_1 = arith.constant 0 : i32
    return %c0_i32, %c0_i32_0 : i32, i32
  }
  func.func @transform_5(%arg0: i32) -> (i32, i32) {
    %c0_i32 = arith.constant 0 : i32
    %c0_i32_0 = arith.constant 0 : i32
    %c0_i32_1 = arith.constant 0 : i32
    return %c0_i32, %c0_i32_0 : i32, i32
  }
  func.func @transform_6(%arg0: i32) -> (i32, i32) {
    %c0_i32 = arith.constant 0 : i32
    %c0_i32_0 = arith.constant 0 : i32
    %c0_i32_1 = arith.constant 0 : i32
    return %c0_i32, %c0_i32_0 : i32, i32
  }
  func.func @transform_7(%arg0: i32) -> (i32, i32) {
    %c0_i32 = arith.constant 0 : i32
    %c0_i32_0 = arith.constant 0 : i32
    return %arg0, %c0_i32 : i32, i32
  }
}

</mosaic_0001>

<llo_original>
// kernel: tpu_custom_call.1
$region0: #{tpu_custom_call.1}
  #allocation0 [shape = 'u32[]', space=smem, size = 0x4, offset = 0x4, fixed_abs, tag = 'smem constant byte address 0x4 - core index']
  #allocation1 [shape = 'u32[144,128]{1,0:T(1,128)}', space=vmem, size = 0x12000, scoped, tag = 'internal scratch']
  %s0 = inlined_call_operand.vmem [shape: f32[56,32], index: 0, kind: input, shape index: {}]
  %s1 = inlined_call_operand.vmem [shape: f32[32,128], index: 1, kind: input, shape index: {}]
  %s2 = inlined_call_operand.vmem [shape: f32[1,128], index: 2, kind: input, shape index: {}]
  %s3 = inlined_call_operand.hbm [shape: f32[128,128], index: 3, kind: input, shape index: {}]
  %s4 = inlined_call_operand.vmem [shape: f32[1,128], index: 4, kind: input, shape index: {}]
  %s5 = inlined_call_operand.hbm [shape: f32[128,128], index: 5, kind: input, shape index: {}]
  %s6 = inlined_call_operand.vmem [shape: f32[1,128], index: 6, kind: input, shape index: {}]
  %s7 = inlined_call_operand.hbm [shape: f32[56,128], index: 7, kind: output, shape index: {}]
  %s8 = sld [smem:[#allocation0]]
  $region69: #{tpu_custom_call.1} parent=0
    _
  %s10 = ssub.s32 1, %s8
  %s11 = scalar_select 0, %s10, %s8
  $region1: #{tpu_custom_call.1} parent=0
    #allocation2 [shape = 'u8[65536]{0}', space=vmem, size = 0x10000, scoped, tag = 'input window, operand 3, single buffered']
    #allocation3 [shape = 's32[2]{0}', space=sflag, size = 0x8, scoped, tag = 'scoped memory for tpu_custom_call.1']
    #allocation4 [shape = 's32[2]{0}', space=sflag, size = 0x8, scoped, tag = 'scoped memory for tpu_custom_call.1']
    #allocation5 [shape = 'u8[65536]{0}', space=vmem, size = 0x10000, scoped, tag = 'input window, operand 5, single buffered']
    #allocation6 [shape = 's32[1]{0}', space=sflag, size = 0x4, scoped, tag = 'scoped memory for tpu_custom_call.1']
    #allocation7 [shape = 'u8[8192]{0}', space=vmem, size = 0x2000, scoped, tag = 'output window, operand 0']
    %12 = vsyncpa [#allocation3], 0
    %13 = vsyncpa [#allocation6], 0
    %14 = vsyncpa [#allocation4], 0
    %s15 = scalar_lea.sflag [#allocation4], 1
    %16 = vsyncpa %s15, 0
    loop: start=0, step=1, limit=9
    $region2: #{tpu_custom_call.1} parent=1 // loop_pre_header
      _
    $region3: #{tpu_custom_call.1} parent=1 // loop_header
      %s18 = sphi 0, %s22
      %p19 = scmp.ge.s32.totalorder %s18, 9
      %s28 = sphi 0, %s30
      %s31 = sphi 0, %s28
      %s32 = sphi 0, %s31
      %s48 = sphi 0, %s32
      %s52 = sphi 0, %s52
      %s54 = sphi 0, %s52
      %s55 = sphi 0, %s54
      %s69 = sphi 0, %s55
      %s73 = sphi 0, %s73
      %s75 = sphi 0, %s73
      %s76 = sphi 0, %s75
      %s90 = sphi 0, %s76
      %s94 = sphi 0, %s94
      %s96 = sphi 0, %s94
      %s97 = sphi 0, %s96
      %s111 = sphi 0, %s97
      %s115 = sphi 0, %s115
      %s117 = sphi 0, %s115
      %s118 = sphi 0, %s117
      %s132 = sphi 0, %s118
      %s136 = sphi 0, %s136
      %s138 = sphi 0, %s136
      %s139 = sphi 0, %s138
      %s153 = sphi 0, %s139
      %s157 = sphi 0, %s157
      %s159 = sphi 0, %s157
      %s160 = sphi 0, %s159
      %s174 = sphi 0, %s160
      %s180 = sphi 0, %s182
      %s183 = sphi 0, %s180
      %s184 = sphi 0, %s183
      %s200 = sphi 0, %s184
    $region4: #{tpu_custom_call.1} parent=1 // loop_header_branch
      %21 = sbr.rel (%p19) target = $region8
    $region5: #{tpu_custom_call.1} parent=1 // loop_body
      %s23 = ssub.s32 %s18, 1
      %s24 = ssub.s32 %s18, 2
      %s25 = sadd.s32 %s18, 1
      %s26 = ssub.s32 %s18, %s25
      %p27 = scmp.eq.s32.totalorder %s26, 0
      %s29 = sadd.s32 %s28, 1
      %s30 = scalar_select %p27, %s28, %s29
      %p33 = pneg %p27
      %p34 = scmp.eq.s32.totalorder %s18, 6
      %p35 = por %p33, %p34
      %p36 = scmp.ne.s32.totalorder %s28, %s31
      %p37 = scmp.eq.s32.totalorder %s18, 0
      %p38 = por %p36, %p37
      %p39 = scmp.ne.s32.totalorder %s28, %s31
      %p40 = scmp.eq.s32.totalorder %s23, 6
      %p41 = por %p39, %p40
      %p42 = scmp.ne.s32.totalorder %s31, %s32
      %p43 = scmp.eq.s32.totalorder %s23, 0
      %p44 = por %p42, %p43
      %p45 = scmp.ne.s32.totalorder %s31, %s32
      %p46 = scmp.eq.s32.totalorder %s24, 6
      %p47 = por %p45, %p46
      %p49 = scmp.ne.s32.totalorder %s32, %s48
      %p50 = scmp.eq.s32.totalorder %s24, 0
      %p51 = por %p49, %p50
      %s53 = sadd.s32 %s52, 1
      %p56 = scmp.eq.s32.totalorder %s18, 6
      %p57 = scmp.ne.s32.totalorder %s52, %s54
      %p58 = scmp.eq.s32.totalorder %s18, 0
      %p59 = por %p57, %p58
      %p60 = scmp.ne.s32.totalorder %s52, %s54
      %p61 = scmp.eq.s32.totalorder %s23, 6
      %p62 = por %p60, %p61
      %p63 = scmp.ne.s32.totalorder %s54, %s55
      %p64 = scmp.eq.s32.totalorder %s23, 0
      %p65 = por %p63, %p64
      %p66 = scmp.ne.s32.totalorder %s54, %s55
      %p67 = scmp.eq.s32.totalorder %s24, 6
      %p68 = por %p66, %p67
      %p70 = scmp.ne.s32.totalorder %s55, %s69
      %p71 = scmp.eq.s32.totalorder %s24, 0
      %p72 = por %p70, %p71
      %s74 = sadd.s32 %s73, 1
      %p77 = scmp.eq.s32.totalorder %s18, 6
      %p78 = scmp.ne.s32.totalorder %s73, %s75
      %p79 = scmp.eq.s32.totalorder %s18, 0
      %p80 = por %p78, %p79
      %p81 = scmp.ne.s32.totalorder %s73, %s75
      %p82 = scmp.eq.s32.totalorder %s23, 6
      %p83 = por %p81, %p82
      %p84 = scmp.ne.s32.totalorder %s75, %s76
      %p85 = scmp.eq.s32.totalorder %s23, 0
      %p86 = por %p84, %p85
      %p87 = scmp.ne.s32.totalorder %s75, %s76
      %p88 = scmp.eq.s32.totalorder %s24, 6
      %p89 = por %p87, %p88
      %p91 = scmp.ne.s32.totalorder %s76, %s90
      %p92 = scmp.eq.s32.totalorder %s24, 0
      %p93 = por %p91, %p92
      %s95 = sadd.s32 %s94, 1
      %p98 = scmp.eq.s32.totalorder %s18, 6
      %p99 = scmp.ne.s32.totalorder %s94, %s96
      %p100 = scmp.eq.s32.totalorder %s18, 0
      %p101 = por %p99, %p100
      %p102 = scmp.ne.s32.totalorder %s94, %s96
      %p103 = scmp.eq.s32.totalorder %s23, 6
      %p104 = por %p102, %p103
      %p105 = scmp.ne.s32.totalorder %s96, %s97
      %p106 = scmp.eq.s32.totalorder %s23, 0
      %p107 = por %p105, %p106
      %p108 = scmp.ne.s32.totalorder %s96, %s97
      %p109 = scmp.eq.s32.totalorder %s24, 6
      %p110 = por %p108, %p109
      %p112 = scmp.ne.s32.totalorder %s97, %s111
      %p113 = scmp.eq.s32.totalorder %s24, 0
      %p114 = por %p112, %p113
      %s116 = sadd.s32 %s115, 1
      %p119 = scmp.eq.s32.totalorder %s18, 6
      %p120 = scmp.ne.s32.totalorder %s115, %s117
      %p121 = scmp.eq.s32.totalorder %s18, 0
      %p122 = por %p120, %p121
      %p123 = scmp.ne.s32.totalorder %s115, %s117
      %p124 = scmp.eq.s32.totalorder %s23, 6
      %p125 = por %p123, %p124
      %p126 = scmp.ne.s32.totalorder %s117, %s118
      %p127 = scmp.eq.s32.totalorder %s23, 0
      %p128 = por %p126, %p127
      %p129 = scmp.ne.s32.totalorder %s117, %s118
      %p130 = scmp.eq.s32.totalorder %s24, 6
      %p131 = por %p129, %p130
      %p133 = scmp.ne.s32.totalorder %s118, %s132
      %p134 = scmp.eq.s32.totalorder %s24, 0
      %p135 = por %p133, %p134
      %s137 = sadd.s32 %s136, 1
      %p140 = scmp.eq.s32.totalorder %s18, 6
      %p141 = scmp.ne.s32.totalorder %s136, %s138
      %p142 = scmp.eq.s32.totalorder %s18, 0
      %p143 = por %p141, %p142
      %p144 = scmp.ne.s32.totalorder %s136, %s138
      %p145 = scmp.eq.s32.totalorder %s23, 6
      %p146 = por %p144, %p145
      %p147 = scmp.ne.s32.totalorder %s138, %s139
      %p148 = scmp.eq.s32.totalorder %s23, 0
      %p149 = por %p147, %p148
      %p150 = scmp.ne.s32.totalorder %s138, %s139
      %p151 = scmp.eq.s32.totalorder %s24, 6
      %p152 = por %p150, %p151
      %p154 = scmp.ne.s32.totalorder %s139, %s153
      %p155 = scmp.eq.s32.totalorder %s24, 0
      %p156 = por %p154, %p155
      %s158 = sadd.s32 %s157, 1
      %p161 = scmp.eq.s32.totalorder %s18, 6
      %p162 = scmp.ne.s32.totalorder %s157, %s159
      %p163 = scmp.eq.s32.totalorder %s18, 0
      %p164 = por %p162, %p163
      %p165 = scmp.ne.s32.totalorder %s157, %s159
      %p166 = scmp.eq.s32.totalorder %s23, 6
      %p167 = por %p165, %p166
      %p168 = scmp.ne.s32.totalorder %s159, %s160
      %p169 = scmp.eq.s32.totalorder %s23, 0
      %p170 = por %p168, %p169
      %p171 = scmp.ne.s32.totalorder %s159, %s160
      %p172 = scmp.eq.s32.totalorder %s24, 6
      %p173 = por %p171, %p172
      %p175 = scmp.ne.s32.totalorder %s160, %s174
      %p176 = scmp.eq.s32.totalorder %s24, 0
      %p177 = por %p175, %p176
      %s178 = ssub.s32 %s18, %s25
      %p179 = scmp.eq.s32.totalorder %s178, 0
      %s181 = sadd.s32 %s180, 1
      %s182 = scalar_select %p179, %s180, %s181
      %p185 = pneg %p179
      %p186 = scmp.eq.s32.totalorder %s18, 6
      %p187 = por %p185, %p186
      %p188 = scmp.ne.s32.totalorder %s180, %s183
      %p189 = scmp.eq.s32.totalorder %s18, 0
      %p190 = por %p188, %p189
      %p191 = scmp.ne.s32.totalorder %s180, %s183
      %p192 = scmp.eq.s32.totalorder %s23, 6
      %p193 = por %p191, %p192
      %p194 = scmp.ne.s32.totalorder %s183, %s184
      %p195 = scmp.eq.s32.totalorder %s23, 0
      %p196 = por %p194, %p195
      %p197 = scmp.ne.s32.totalorder %s183, %s184
      %p198 = scmp.eq.s32.totalorder %s24, 6
      %p199 = por %p197, %p198
      %p201 = scmp.ne.s32.totalorder %s184, %s200
      %p202 = scmp.eq.s32.totalorder %s24, 0
      %p203 = por %p201, %p202
      %p204 = scmp.le.s32.totalorder 1, %s18
      %p205 = scmp.lt.s32.totalorder %s18, 8
      %p206 = pnand %p204, %p205
      %p207 = pneg %p206
      // Predicated region
      $region9: #{tpu_custom_call.1} parent=5 // pred_check
        _
      $region10: #{tpu_custom_call.1} parent=5 // pred_check_branch
        %209 = sbr.rel (%p206) target = $region12
      $region11: #{tpu_custom_call.1} parent=5 // pred_region
        %s210 = ssub.s32 %s18, 1
        // Predicated region
        $region13: #{tpu_custom_call.1} parent=11 // pred_check
          %p211 = pneg %p65
        $region14: #{tpu_custom_call.1} parent=11 // pred_check_branch
          %213 = sbr.rel (%p211) target = $region16
        $region15: #{tpu_custom_call.1} parent=11 // pred_region
          _
        $region16: #{tpu_custom_call.1} parent=11 // pred_fallthru
          _
        // Predicated region
        $region17: #{tpu_custom_call.1} parent=11 // pred_check
          %p214 = pneg %p86
        $region18: #{tpu_custom_call.1} parent=11 // pred_check_branch
          %216 = sbr.rel (%p214) target = $region20
        $region19: #{tpu_custom_call.1} parent=11 // pred_region
          _
        $region20: #{tpu_custom_call.1} parent=11 // pred_fallthru
          _
        // Predicated region
        $region21: #{tpu_custom_call.1} parent=11 // pred_check
          %p217 = pneg %p107
        $region22: #{tpu_custom_call.1} parent=11 // pred_check_branch
          %219 = sbr.rel (%p217) target = $region24
        $region23: #{tpu_custom_call.1} parent=11 // pred_region
          %s221 = ssub.s32 2048, 2048
          %222 = vsyncadd [#allocation3], %s221
          %s223 = sshll.u32 [#allocation2], 4
          %s224 = int_to_ptr.vmem [resolvable:$true] %s223
          %229 = dma.hbm_to_vmem [thread:$0]  %s3, 2048, %s224, [#allocation3], 128, 128, 8
        $region24: #{tpu_custom_call.1} parent=11 // pred_fallthru
          _
        // Predicated region
        $region25: #{tpu_custom_call.1} parent=11 // pred_check
          %p230 = pneg %p128
        $region26: #{tpu_custom_call.1} parent=11 // pred_check_branch
          %232 = sbr.rel (%p230) target = $region28
        $region27: #{tpu_custom_call.1} parent=11 // pred_region
          _
        $region28: #{tpu_custom_call.1} parent=11 // pred_fallthru
          _
        // Predicated region
        $region29: #{tpu_custom_call.1} parent=11 // pred_check
          %p233 = pneg %p149
        $region30: #{tpu_custom_call.1} parent=11 // pred_check_branch
          %235 = sbr.rel (%p233) target = $region32
        $region31: #{tpu_custom_call.1} parent=11 // pred_region
          %s237 = ssub.s32 2048, 2048
          %238 = vsyncadd [#allocation6], %s237
          %s239 = sshll.u32 [#allocation5], 4
          %s240 = int_to_ptr.vmem [resolvable:$true] %s239
          %245 = dma.hbm_to_vmem [thread:$0]  %s5, 2048, %s240, [#allocation6], 128, 128, 8
        $region32: #{tpu_custom_call.1} parent=11 // pred_fallthru
          _
        // Predicated region
        $region33: #{tpu_custom_call.1} parent=11 // pred_check
          %p246 = pneg %p170
        $region34: #{tpu_custom_call.1} parent=11 // pred_check_branch
          %248 = sbr.rel (%p246) target = $region36
        $region35: #{tpu_custom_call.1} parent=11 // pred_region
          _
        $region36: #{tpu_custom_call.1} parent=11 // pred_fallthru
          _
      $region12: #{tpu_custom_call.1} parent=5 // pred_fallthru
        _
      %p249 = scmp.lt.s32.totalorder %s18, 7
      // Predicated region
      $region37: #{tpu_custom_call.1} parent=5 // pred_check
        %p250 = pneg %p249
      $region38: #{tpu_custom_call.1} parent=5 // pred_check_branch
        %252 = sbr.rel (%p250) target = $region40
      $region39: #{tpu_custom_call.1} parent=5 // pred_region
        // Predicated region
        $region41: #{tpu_custom_call.1} parent=39 // pred_check
          %p253 = pneg %p38
        $region42: #{tpu_custom_call.1} parent=39 // pred_check_branch
          %255 = sbr.rel (%p253) target = $region44
        $region43: #{tpu_custom_call.1} parent=39 // pred_region
          %p256 = scmp.lt.s32.totalorder %s18, 6
          %s257 = scalar_select %p256, %s18, 6
          %s258 = smul.addr %s257, 8
          %s259 = scalar_lea.vmem %s0, %s258
        $region44: #{tpu_custom_call.1} parent=39 // pred_fallthru
          _
      $region40: #{tpu_custom_call.1} parent=5 // pred_fallthru
        _
      %p260 = scmp.le.s32.totalorder 1, %s18
      %p261 = scmp.lt.s32.totalorder %s18, 8
      %p262 = pnand %p260, %p261
      %p263 = pneg %p262
      // Predicated region
      $region45: #{tpu_custom_call.1} parent=5 // pred_check
        _
      $region46: #{tpu_custom_call.1} parent=5 // pred_check_branch
        %265 = sbr.rel (%p262) target = $region48
      $region47: #{tpu_custom_call.1} parent=5 // pred_region
        %s266 = ssub.s32 %s18, 1
        // Predicated region
        $region49: #{tpu_custom_call.1} parent=47 // pred_check
          %p267 = pneg %p107
        $region50: #{tpu_custom_call.1} parent=47 // pred_check_branch
          %269 = sbr.rel (%p267) target = $region52
        $region51: #{tpu_custom_call.1} parent=47 // pred_region
          %270 = dma.done [#allocation3], 2048
        $region52: #{tpu_custom_call.1} parent=47 // pred_fallthru
          _
        // Predicated region
        $region53: #{tpu_custom_call.1} parent=47 // pred_check
          %p271 = pneg %p149
        $region54: #{tpu_custom_call.1} parent=47 // pred_check_branch
          %273 = sbr.rel (%p271) target = $region56
        $region55: #{tpu_custom_call.1} parent=47 // pred_region
          %274 = dma.done [#allocation6], 2048
        $region56: #{tpu_custom_call.1} parent=47 // pred_fallthru
          _
        %p275 = scmp.lt.s32.totalorder %s23, 6
        %s276 = scalar_select %p275, %s23, 6
        %s277 = smul.addr %s276, 8
        %s278 = scalar_lea.vmem %s0, %s277
        %p279 = pneg %p44
        %p280 = pneg %p41
        %p281 = pneg %p65
        %p282 = pneg %p62
        %p283 = pneg %p86
        %p284 = pneg %p83
        %p285 = pneg %p107
        %p286 = pneg %p104
        %p287 = pneg %p128
        %p288 = pneg %p125
        %p289 = pneg %p149
        %p290 = pneg %p146
        %p291 = pneg %p170
        %p292 = pneg %p167
        %p293 = pneg %p196
        %p294 = pneg %p193
        %s295 = sand.u32 %s183, 1
        %s296 = scalar_lea.sflag [#allocation4], %s295
        %s297 = sand.u32 %s183, 1
        %s298 = smul.addr %s297, 8
        %s299 = scalar_lea.vmem [#allocation7], %s298
        %p300 = scmp.lt.s32.totalorder %s23, 6
        %s301 = scalar_select %p300, %s23, 6
        %s302 = smul.addr %s301, 8
        %s303 = scalar_lea.vmem %s0, %s302
        %v304 = vld [vmem:[%s303] sm:$0xff]
        %v305 = vld [vmem:[%s1] sm:$0xff]
        %v306 = vld [vmem:[%s1 + $0x8] sm:$0xff]
        %v307 = vld [vmem:[%s1 + $0x10] sm:$0xff]
        %v308 = vld [vmem:[%s1 + $0x18] sm:$0xff]
        %v309 = vld [vmem:[%s2] sm:$0x1]
        %v311 = vlaneseq
        %v312 = vshrl.u32 %v311, 7
        %v313 = vsub.s32 0, %v312
        %v314 = vrot.slane %v309, %v313
        %vm316 = vcmask 261120
        %v318 = vsel %vm316, %v304, 0
        %320 = vmatprep.subr.mxu0 0.0
        %321 = vmatpush1.msra.mxu0 %v305
        %322 = vmatprep.subr.mxu0 0.0
        %323 = vmatpush1.msra.mxu0 %v306
        %324 = vmatprep.subr.mxu0 0.0
        %325 = vmatpush1.msra.mxu0 %v307
        %326 = vmatprep.subr.mxu0 0.0
        %327 = vmatpush1.msra.mxu0 %v308
        %328 = vmatprep.subr.mxu0 0.0
        %329 = vmatpush1.msra.mxu0 0.0
        %330 = vmatprep.subr.mxu0 0.0
        %331 = vmatpush1.msra.mxu0 0.0
        %332 = vmatprep.subr.mxu0 0.0
        %333 = vmatpush1.msra.mxu0 0.0
        %334 = vmatprep.subr.mxu0 0.0
        %335 = vmatpush1.msra.mxu0 0.0
        %336 = vmatprep.subr.mxu0 0.0
        %337 = vmatpush1.msra.mxu0 0.0
        %338 = vmatprep.subr.mxu0 0.0
        %339 = vmatpush1.msra.mxu0 0.0
        %340 = vmatprep.subr.mxu0 0.0
        %341 = vmatpush1.msra.mxu0 0.0
        %342 = vmatprep.subr.mxu0 0.0
        %343 = vmatpush1.msra.mxu0 0.0
        %344 = vmatprep.subr.mxu0 0.0
        %345 = vmatpush1.msra.mxu0 0.0
        %346 = vmatprep.subr.mxu0 0.0
        %347 = vmatpush1.msra.mxu0 0.0
        %348 = vmatprep.subr.mxu0 0.0
        %349 = vmatpush1.msra.mxu0 0.0
        %350 = vmatprep.subr.mxu0 0.0
        %351 = vmatpush1.msra.mxu0 0.0
        %352 = vmatprep.subr.mxu0 0.0
        %353 = vmatpush1.msra.mxu0 0.0
        %354 = vmatprep.subr.mxu0 0.0
        %355 = vmatpush1.msra.mxu0 0.0
        %356 = vmatprep.subr.mxu0 0.0
        %357 = vmatpush1.msra.mxu0 0.0
        %358 = vmatprep.subr.mxu0 0.0
        %359 = vmatpush1.msra.mxu0 0.0
        %360 = vmatprep.subr.mxu0 0.0
        %361 = vmatpush1.msra.mxu0 0.0
        %362 = vmatprep.subr.mxu0 0.0
        %363 = vmatpush1.msra.mxu0 0.0
        %364 = vmatprep.subr.mxu0 0.0
        %365 = vmatpush1.msra.mxu0 0.0
        %366 = vmatprep.subr.mxu0 0.0
        %367 = vmatpush1.msra.mxu0 0.0
        %368 = vmatprep.subr.mxu0 0.0
        %369 = vmatpush1.msra.mxu0 0.0
        %370 = vmatprep.subr.mxu0 0.0
        %371 = vmatpush1.msra.mxu0 0.0
        %372 = vmatprep.subr.mxu0 0.0
        %373 = vmatpush1.msra.mxu0 0.0
        %374 = vmatprep.subr.mxu0 0.0
        %375 = vmatpush1.msra.mxu0 0.0
        %376 = vmatprep.subr.mxu0 0.0
        %377 = vmatpush1.msra.mxu0 0.0
        %378 = vmatprep.subr.mxu0 0.0
        %379 = vmatpush1.msra.mxu0 0.0
        %380 = vmatprep.subr.mxu0 0.0
        %381 = vmatpush1.msra.mxu0 0.0
        %382 = vmatprep.subr.mxu0 0.0
        %383 = vmatpush1.msra.mxu0 0.0
        %384 = vmatprep.mubr.f32.mxu0 0.0
        %385 = vmatmul.mubr.f32.gmra.mrb[0].mxu0 %v318
        %v386 = vpop.f32.mrb[0].mxu0
        %v387 = vadd.f32 %v314, %v386
        %v388 = vpop.f32.mrb[0].mxu0
        %389 = vdwg.mxu0
        %v390 = vmax.f32 %v387, 0.0
        %v391 = vld [vmem:[#allocation2] sm:$0xff]
        %v392 = vld [vmem:[#allocation2 + $0x8] sm:$0xff]
        %v393 = vld [vmem:[#allocation2 + $0x10] sm:$0xff]
        %v394 = vld [vmem:[#allocation2 + $0x18] sm:$0xff]
        %v395 = vld [vmem:[#allocation2 + $0x20] sm:$0xff]
        %v396 = vld [vmem:[#allocation2 + $0x28] sm:$0xff]
        %v397 = vld [vmem:[#allocation2 + $0x30] sm:$0xff]
        %v398 = vld [vmem:[#allocation2 + $0x38] sm:$0xff]
        %v399 = vld [vmem:[#allocation2 + $0x40] sm:$0xff]
        %v400 = vld [vmem:[#allocation2 + $0x48] sm:$0xff]
        %v401 = vld [vmem:[#allocation2 + $0x50] sm:$0xff]
        %v402 = vld [vmem:[#allocation2 + $0x58] sm:$0xff]
        %v403 = vld [vmem:[#allocation2 + $0x60] sm:$0xff]
        %v404 = vld [vmem:[#allocation2 + $0x68] sm:$0xff]
        %v405 = vld [vmem:[#allocation2 + $0x70] sm:$0xff]
        %v406 = vld [vmem:[#allocation2 + $0x78] sm:$0xff]
        %v407 = vld [vmem:[%s4] sm:$0x1]
        %v409 = vlaneseq
        %v410 = vshrl.u32 %v409, 7
        %v411 = vsub.s32 0, %v410
        %v412 = vrot.slane %v407, %v411
        %414 = vmatprep.subr.mxu0 0.0
        %415 = vmatpush1.msra.mxu0 %v391
        %416 = vmatprep.subr.mxu0 0.0
        %417 = vmatpush1.msra.mxu0 %v392
        %418 = vmatprep.subr.mxu0 0.0
        %419 = vmatpush1.msra.mxu0 %v393
        %420 = vmatprep.subr.mxu0 0.0
        %421 = vmatpush1.msra.mxu0 %v394
        %422 = vmatprep.subr.mxu0 0.0
        %423 = vmatpush1.msra.mxu0 %v395
        %424 = vmatprep.subr.mxu0 0.0
        %425 = vmatpush1.msra.mxu0 %v396
        %426 = vmatprep.subr.mxu0 0.0
        %427 = vmatpush1.msra.mxu0 %v397
        %428 = vmatprep.subr.mxu0 0.0
        %429 = vmatpush1.msra.mxu0 %v398
        %430 = vmatprep.subr.mxu0 0.0
        %431 = vmatpush1.msra.mxu0 %v399
        %432 = vmatprep.subr.mxu0 0.0
        %433 = vmatpush1.msra.mxu0 %v400
        %434 = vmatprep.subr.mxu0 0.0
        %435 = vmatpush1.msra.mxu0 %v401
        %436 = vmatprep.subr.mxu0 0.0
        %437 = vmatpush1.msra.mxu0 %v402
        %438 = vmatprep.subr.mxu0 0.0
        %439 = vmatpush1.msra.mxu0 %v403
        %440 = vmatprep.subr.mxu0 0.0
        %441 = vmatpush1.msra.mxu0 %v404
        %442 = vmatprep.subr.mxu0 0.0
        %443 = vmatpush1.msra.mxu0 %v405
        %444 = vmatprep.subr.mxu0 0.0
        %445 = vmatpush1.msra.mxu0 %v406
        %446 = vmatprep.subr.mxu0 0.0
        %447 = vmatpush1.msra.mxu0 0.0
        %448 = vmatprep.subr.mxu0 0.0
        %449 = vmatpush1.msra.mxu0 0.0
        %450 = vmatprep.subr.mxu0 0.0
        %451 = vmatpush1.msra.mxu0 0.0
        %452 = vmatprep.subr.mxu0 0.0
        %453 = vmatpush1.msra.mxu0 0.0
        %454 = vmatprep.subr.mxu0 0.0
        %455 = vmatpush1.msra.mxu0 0.0
        %456 = vmatprep.subr.mxu0 0.0
        %457 = vmatpush1.msra.mxu0 0.0
        %458 = vmatprep.subr.mxu0 0.0
        %459 = vmatpush1.msra.mxu0 0.0
        %460 = vmatprep.subr.mxu0 0.0
        %461 = vmatpush1.msra.mxu0 0.0
        %462 = vmatprep.subr.mxu0 0.0
        %463 = vmatpush1.msra.mxu0 0.0
        %464 = vmatprep.subr.mxu0 0.0
        %465 = vmatpush1.msra.mxu0 0.0
        %466 = vmatprep.subr.mxu0 0.0
        %467 = vmatpush1.msra.mxu0 0.0
        %468 = vmatprep.subr.mxu0 0.0
        %469 = vmatpush1.msra.mxu0 0.0
        %470 = vmatprep.subr.mxu0 0.0
        %471 = vmatpush1.msra.mxu0 0.0
        %472 = vmatprep.subr.mxu0 0.0
        %473 = vmatpush1.msra.mxu0 0.0
        %474 = vmatprep.subr.mxu0 0.0
        %475 = vmatpush1.msra.mxu0 0.0
        %476 = vmatprep.subr.mxu0 0.0
        %477 = vmatpush1.msra.mxu0 0.0
        %478 = vmatprep.mubr.f32.mxu0 0.0
        %479 = vmatmul.mubr.f32.gmra.mrb[0].mxu0 %v390
        %v480 = vpop.f32.mrb[0].mxu0
        %v481 = vadd.f32 %v412, %v480
        %v482 = vpop.f32.mrb[0].mxu0
        %483 = vdwg.mxu0
        %v484 = vmax.f32 %v481, 0.0
        %v485 = vld [vmem:[#allocation5] sm:$0xff]
        %v486 = vld [vmem:[#allocation5 + $0x8] sm:$0xff]
        %v487 = vld [vmem:[#allocation5 + $0x10] sm:$0xff]
        %v488 = vld [vmem:[#allocation5 + $0x18] sm:$0xff]
        %v489 = vld [vmem:[#allocation5 + $0x20] sm:$0xff]
        %v490 = vld [vmem:[#allocation5 + $0x28] sm:$0xff]
        %v491 = vld [vmem:[#allocation5 + $0x30] sm:$0xff]
        %v492 = vld [vmem:[#allocation5 + $0x38] sm:$0xff]
        %v493 = vld [vmem:[#allocation5 + $0x40] sm:$0xff]
        %v494 = vld [vmem:[#allocation5 + $0x48] sm:$0xff]
        %v495 = vld [vmem:[#allocation5 + $0x50] sm:$0xff]
        %v496 = vld [vmem:[#allocation5 + $0x58] sm:$0xff]
        %v497 = vld [vmem:[#allocation5 + $0x60] sm:$0xff]
        %v498 = vld [vmem:[#allocation5 + $0x68] sm:$0xff]
        %v499 = vld [vmem:[#allocation5 + $0x70] sm:$0xff]
        %v500 = vld [vmem:[#allocation5 + $0x78] sm:$0xff]
        %v501 = vld [vmem:[%s6] sm:$0x1]
        %v503 = vlaneseq
        %v504 = vshrl.u32 %v503, 7
        %v505 = vsub.s32 0, %v504
        %v506 = vrot.slane %v501, %v505
        %508 = vmatprep.subr.mxu0 0.0
        %509 = vmatpush1.msra.mxu0 %v485
        %510 = vmatprep.subr.mxu0 0.0
        %511 = vmatpush1.msra.mxu0 %v486
        %512 = vmatprep.subr.mxu0 0.0
        %513 = vmatpush1.msra.mxu0 %v487
        %514 = vmatprep.subr.mxu0 0.0
        %515 = vmatpush1.msra.mxu0 %v488
        %516 = vmatprep.subr.mxu0 0.0
        %517 = vmatpush1.msra.mxu0 %v489
        %518 = vmatprep.subr.mxu0 0.0
        %519 = vmatpush1.msra.mxu0 %v490
        %520 = vmatprep.subr.mxu0 0.0
        %521 = vmatpush1.msra.mxu0 %v491
        %522 = vmatprep.subr.mxu0 0.0
        %523 = vmatpush1.msra.mxu0 %v492
        %524 = vmatprep.subr.mxu0 0.0
        %525 = vmatpush1.msra.mxu0 %v493
        %526 = vmatprep.subr.mxu0 0.0
        %527 = vmatpush1.msra.mxu0 %v494
        %528 = vmatprep.subr.mxu0 0.0
        %529 = vmatpush1.msra.mxu0 %v495
        %530 = vmatprep.subr.mxu0 0.0
        %531 = vmatpush1.msra.mxu0 %v496
        %532 = vmatprep.subr.mxu0 0.0
        %533 = vmatpush1.msra.mxu0 %v497
        %534 = vmatprep.subr.mxu0 0.0
        %535 = vmatpush1.msra.mxu0 %v498
        %536 = vmatprep.subr.mxu0 0.0
        %537 = vmatpush1.msra.mxu0 %v499
        %538 = vmatprep.subr.mxu0 0.0
        %539 = vmatpush1.msra.mxu0 %v500
        %540 = vmatprep.subr.mxu0 0.0
        %541 = vmatpush1.msra.mxu0 0.0
        %542 = vmatprep.subr.mxu0 0.0
        %543 = vmatpush1.msra.mxu0 0.0
        %544 = vmatprep.subr.mxu0 0.0
        %545 = vmatpush1.msra.mxu0 0.0
        %546 = vmatprep.subr.mxu0 0.0
        %547 = vmatpush1.msra.mxu0 0.0
        %548 = vmatprep.subr.mxu0 0.0
        %549 = vmatpush1.msra.mxu0 0.0
        %550 = vmatprep.subr.mxu0 0.0
        %551 = vmatpush1.msra.mxu0 0.0
        %552 = vmatprep.subr.mxu0 0.0
        %553 = vmatpush1.msra.mxu0 0.0
        %554 = vmatprep.subr.mxu0 0.0
        %555 = vmatpush1.msra.mxu0 0.0
        %556 = vmatprep.subr.mxu0 0.0
        %557 = vmatpush1.msra.mxu0 0.0
        %558 = vmatprep.subr.mxu0 0.0
        %559 = vmatpush1.msra.mxu0 0.0
        %560 = vmatprep.subr.mxu0 0.0
        %561 = vmatpush1.msra.mxu0 0.0
        %562 = vmatprep.subr.mxu0 0.0
        %563 = vmatpush1.msra.mxu0 0.0
        %564 = vmatprep.subr.mxu0 0.0
        %565 = vmatpush1.msra.mxu0 0.0
        %566 = vmatprep.subr.mxu0 0.0
        %567 = vmatpush1.msra.mxu0 0.0
        %568 = vmatprep.subr.mxu0 0.0
        %569 = vmatpush1.msra.mxu0 0.0
        %570 = vmatprep.subr.mxu0 0.0
        %571 = vmatpush1.msra.mxu0 0.0
        %572 = vmatprep.mubr.f32.mxu0 0.0
        %573 = vmatmul.mubr.f32.gmra.mrb[0].mxu0 %v484
        %v574 = vpop.f32.mrb[0].mxu0
        %v575 = vadd.f32 %v506, %v574
        %v576 = vpop.f32.mrb[0].mxu0
        %577 = vdwg.mxu0
        %578 = vmax.xlane.f32.xlu0 %v575
        %v579 = vpop.xlane.xlu0 %578
        %v580 = vsub.f32 %v575, %v579
        %v581 = vmul.f32 %v580, 1.442695
        %v582 = vpow.pop %v581
        %583 = vadd.xlane.f32.xlu0 %v582
        %v584 = vpop.xlane.xlu0 %583
        %v585 = vrcp.pop %v584
        %v586 = vmul.f32 %v584, %v585
        %v587 = vsub.f32 2.0, %v586
        %v588 = vmul.f32 %v585, %v587
        %v589 = vmul.f32 %v582, %v588
        %590 = vst [vmem:[%s299] sm:$0xff] %v589
        %s591 = sand.u32 %s183, 1
        %s592 = scalar_lea.sflag [#allocation4], %s591
        %s593 = sand.u32 %s183, 1
        %s594 = smul.addr %s593, 8
        %s595 = scalar_lea.vmem [#allocation7], %s594
        // Predicated region
        $region57: #{tpu_custom_call.1} parent=47 // pred_check
          %p596 = pneg %p193
        $region58: #{tpu_custom_call.1} parent=47 // pred_check_branch
          %598 = sbr.rel (%p596) target = $region60
        $region59: #{tpu_custom_call.1} parent=47 // pred_region
          %s600 = ssub.s32 128, 128
          %601 = vsyncadd %s592, %s600
          %s602 = smul.addr %s23, 128
          %s603 = scalar_lea.hbm %s7, %s602
          %s605 = sshll.u32 %s595, 4
          %s606 = int_to_ptr.vmem [resolvable:$true] %s605
          %608 = dma.vmem_to_hbm [thread:$0]  %s606, 128, %s603, %s592
        $region60: #{tpu_custom_call.1} parent=47 // pred_fallthru
          _
      $region48: #{tpu_custom_call.1} parent=5 // pred_fallthru
        _
      %p609 = scmp.le.s32.totalorder 2, %s18
      // Predicated region
      $region61: #{tpu_custom_call.1} parent=5 // pred_check
        %p610 = pneg %p609
      $region62: #{tpu_custom_call.1} parent=5 // pred_check_branch
        %612 = sbr.rel (%p610) target = $region64
      $region63: #{tpu_custom_call.1} parent=5 // pred_region
        %s613 = ssub.s32 %s18, 2
        // Predicated region
        $region65: #{tpu_custom_call.1} parent=63 // pred_check
          %p614 = pneg %p199
        $region66: #{tpu_custom_call.1} parent=63 // pred_check_branch
          %616 = sbr.rel (%p614) target = $region68
        $region67: #{tpu_custom_call.1} parent=63 // pred_region
          %s617 = sand.u32 %s184, 1
          %s618 = scalar_lea.sflag [#allocation4], %s617
          %s619 = sand.u32 %s184, 1
          %s620 = smul.addr %s619, 8
          %s621 = scalar_lea.vmem [#allocation7], %s620
          %622 = dma.done %s618, 128
        $region68: #{tpu_custom_call.1} parent=63 // pred_fallthru
          _
      $region64: #{tpu_custom_call.1} parent=5 // pred_fallthru
        _
    $region6: #{tpu_custom_call.1} parent=1 // loop_footer
      %s22 = sadd.s32 1, %s18
    $region7: #{tpu_custom_call.1} parent=1 // loop_footer_branch
      %17 = sbr.rel target = $region3
    $region8: #{tpu_custom_call.1} parent=1 // loop_exit
      _
    %623 = vsyncpa [#allocation3], 1
    %s624 = scalar_lea.sflag [#allocation3], 1
    %625 = vsyncpa %s624, 1
    %626 = vsyncpa [#allocation6], 1
    %627 = vsyncpa [#allocation4], 1
    %s628 = scalar_lea.sflag [#allocation4], 1
    %629 = vsyncpa %s628, 1

</llo_original>
